<compile_context>
chip_gen: v7x
topology: tpu7x:2x2x1
jax: 0.10.0
libtpu: 0.0.40
codegen_flags: <defaults>
</compile_context>

<pallas_src>
import math
import numpy as np
import jax
import jax.numpy as jnp
from jax.experimental import pallas as pl
from jax.experimental.pallas import tpu as pltpu

LOG_2PI = float(np.log(2.0 * np.pi))


def _linear_vae_kernel(x_ref, mu_ref, enc_ref, dec_ref, qlv_ref, ls_ref, out_ref):
    f32 = jnp.float32
    # In-kernel upcasts: no-ops for f32 params, free VPU casts if params are bf16.
    x = x_ref[...].astype(f32)          # (B, D)
    mu = mu_ref[...].astype(f32)        # (1, D)
    enc = enc_ref[...].astype(f32)      # (D, H)
    dec = dec_ref[...].astype(f32)      # (H, D)
    qlv = qlv_ref[...].astype(f32)      # (1, H)  lane-dense row
    log_sigma = ls_ref[0]               # scalar f32 (SMEM)

    B, D = x.shape
    H = qlv.shape[1]

    x_sub_mu = x - mu                                                   # (B, D)
    # Reassociation: x_sub_mu @ (enc @ dec) == (x_sub_mu @ enc) @ dec == q_mu @ dec
    q_mu = jnp.dot(x_sub_mu, enc, preferred_element_type=f32)           # (B, H)
    wvx = jnp.dot(q_mu, dec, preferred_element_type=f32)                # (B, D)

    # ---- analytic reconstruction loss ----
    # Fused residual: xvwwvx - 2*xwvx + xx == ||wvx - x_sub_mu||^2 (exact).
    diff = wvx - x_sub_mu                                               # (B, D)
    resid_mean = jnp.sum(diff * diff) / B                               # scalar

    sigma_sq = jnp.exp(qlv)                                             # (1, H)  EUP
    inv_sigma = jnp.exp(-qlv)                                           # (1, H)  exact 1/sigma^2

    # trace(dec^T diag(sigma^2) dec) = sum_h sigma^2_h * ||dec[h,:]||^2
    # -> a free (1,H)x(H,D) matmul on the otherwise-idle MXU, then a lane reduce.
    tr_wdw = jnp.sum(jnp.dot(sigma_sq, dec * dec, preferred_element_type=f32))

    # Torch broadcasts (B,)/(H,1) -> (H,B) and means over every element; that
    # mean is separable:  mean_{h,b}(s_b / sigma_h) = mean_b(s) * mean_h(1/sigma).
    recon = (tr_wdw + resid_mean) * jnp.mean(inv_sigma)
    loss = 0.5 * (recon + D * (LOG_2PI + log_sigma))

    # ---- KL(q || N(0,1)), p_logvar = 0: mean over batch, sum over hidden ----
    # sum_h mean_b 0.5*(-qlv + exp(qlv) + q_mu^2 - 1)
    kl = 0.5 * (jnp.sum(sigma_sq - qlv) + jnp.sum(q_mu * q_mu) / B - float(H))

    out_ref[...] = jnp.full((1, 1), loss + kl, dtype=jnp.float32)


def linear_vae_forward(x, params):
    """neg_elbo = analytic_loss(x) + KL(q || N(0,1)); returns a scalar."""
    mu = params["mu"]
    enc_w = params["enc_weight"]
    dec_w = params["dec_weight"]
    q_logvar = params["q_logvar"]
    log_sigma = params["log_sigma"]

    B = x.shape[0]
    x2 = x.reshape(B, -1)                       # NCHW -> (B, D) like x.view(B, -1)
    D = x2.shape[1]
    H = q_logvar.shape[0]

    # Advisory cost hint so XLA can overlap this tiny launch-bound custom call
    # with surrounding graph work.
    flops = 4 * B * D * H + 3 * H * D + 6 * B * D
    bytes_accessed = 4 * (B * D + D + 2 * D * H + H + 2)
    cost = pl.CostEstimate(flops=flops, transcendentals=2 * H,
                           bytes_accessed=bytes_accessed)

    out = pl.pallas_call(
        _linear_vae_kernel,
        out_shape=jax.ShapeDtypeStruct((1, 1), jnp.float32),
        in_specs=[
            pl.BlockSpec(memory_space=pltpu.MemorySpace.VMEM),   # x         (B, D)
            pl.BlockSpec(memory_space=pltpu.MemorySpace.VMEM),   # mu        (1, D)
            pl.BlockSpec(memory_space=pltpu.MemorySpace.VMEM),   # enc_w     (D, H)
            pl.BlockSpec(memory_space=pltpu.MemorySpace.VMEM),   # dec_w     (H, D)
            pl.BlockSpec(memory_space=pltpu.MemorySpace.VMEM),   # q_logvar  (1, H) lane-dense
            pl.BlockSpec(memory_space=pltpu.MemorySpace.SMEM),   # log_sigma (1,)
        ],
        out_specs=pl.BlockSpec(memory_space=pltpu.MemorySpace.VMEM),
        cost_estimate=cost,
    )(
        x2,
        mu.reshape(1, D),
        enc_w,
        dec_w,
        q_logvar.reshape(1, H),                       # lane-dense row, no in-kernel transpose
        log_sigma.reshape(1).astype(jnp.float32),     # SMEM scalar stays 32-bit
    )
    return out[0, 0]


def _reference_neg_elbo(x, params):
    """Pure-JAX replica of the PyTorch forward (analytic path) for checking."""
    mu, enc, dec = params["mu"], params["enc_weight"], params["dec_weight"]
    qlv, ls = params["q_logvar"], params["log_sigma"]
    B = x.shape[0]
    xf = x.reshape(B, -1)
    D = xf.shape[1]
    xm = xf - mu
    q_mu = xm @ enc
    wv = enc @ dec
    wvx = xm @ wv
    xvwwvx = jnp.sum(wvx * wvx, axis=1)
    sigma_sq = jnp.exp(qlv)[:, None]                    # (H, 1) — as in torch code
    tr_wdw = jnp.trace(dec.T @ (sigma_sq * dec))
    xwvx = jnp.sum(wvx * xm, axis=1)
    xx = jnp.sum(xm * xm, axis=1)
    loss = jnp.mean(0.5 * ((tr_wdw + xvwwvx - 2.0 * xwvx + xx) / sigma_sq
                           + D * (LOG_2PI + ls)))
    p_logvar = 2.0 * math.log(1.0)
    kl = jnp.sum(jnp.mean(
        0.5 * (p_logvar - qlv + (jnp.exp(qlv) + q_mu ** 2) / math.exp(p_logvar) - 1.0),
        axis=0))
    return loss + kl


if __name__ == "__main__":
    # Small shapes consistent with the module: x flattens to input_dim = 256,
    # hidden_dim = 32, batch = 8.
    B, C, Hs, Ws = 8, 1, 16, 16
    D = C * Hs * Ws
    Hd = 32

    key = jax.random.PRNGKey(0)
    kx, k1, k2, k3, k4 = jax.random.split(key, 5)
    x = jax.random.normal(kx, (B, C, Hs, Ws), dtype=jnp.float32)

    # Deterministic parameter init (the PyTorch module uses zeros/ones; small
    # random values are used here so the matmul/reduction path is non-trivial).
    params = {
        "enc_weight": 0.05 * jax.random.normal(k1, (D, Hd), dtype=jnp.float32),
        "dec_weight": 0.05 * jax.random.normal(k2, (Hd, D), dtype=jnp.float32),
        "mu": 0.1 * jax.random.normal(k3, (D,), dtype=jnp.float32),
        "q_logvar": 0.1 * jax.random.normal(k4, (Hd,), dtype=jnp.float32),
        # sigma_init = 1.0  ->  log_sigma = log(1.0 * ones(1)) = zeros(1)
        "log_sigma": jnp.log(1.0 * jnp.ones((1,), dtype=jnp.float32)),
    }

    # TODO(synk): stochastic_ELBO=True branch (torch ... .normal_() sampling +
    # stochastic_loss) not implemented; default analytic path only.

    neg_elbo = jax.block_until_ready(linear_vae_forward(x, params))
    ref = jax.block_until_ready(_reference_neg_elbo(x, params))
    assert bool(jnp.isfinite(neg_elbo))
    # Tighter tolerance than before: exact exp(-qlv) replaces the approx reciprocal.
    np.testing.assert_allclose(float(neg_elbo), float(ref), rtol=1e-3, atol=1e-3)
    print("KERNEL_OK")
</pallas_src>

<mosaic_0001>
module attributes {stable_mosaic.version = 11 : i64} {
  func.func @_linear_vae_kernel(%arg0: memref<8x256xf32, #tpu.memory_space<vmem>>, %arg1: memref<1x256xf32, #tpu.memory_space<vmem>>, %arg2: memref<256x32xf32, #tpu.memory_space<vmem>>, %arg3: memref<32x256xf32, #tpu.memory_space<vmem>>, %arg4: memref<1x32xf32, #tpu.memory_space<vmem>>, %arg5: memref<1xf32, #tpu.memory_space<smem>>, %arg6: memref<1x1xf32, #tpu.memory_space<vmem>>) attributes {dimension_semantics = [], scalar_prefetch = 0 : i64, scratch_operands = 0 : i64, tpu.core_type = #tpu.core_type<tc>} {
    %c0 = arith.constant 0 : index
    %c0_0 = arith.constant 0 : index
    %0 = vector.load %arg0[%c0, %c0_0] : memref<8x256xf32, #tpu.memory_space<vmem>>, vector<8x256xf32>
    %c0_1 = arith.constant 0 : index
    %c0_2 = arith.constant 0 : index
    %1 = vector.load %arg1[%c0_1, %c0_2] : memref<1x256xf32, #tpu.memory_space<vmem>>, vector<1x256xf32>
    %c0_3 = arith.constant 0 : index
    %c0_4 = arith.constant 0 : index
    %2 = vector.load %arg2[%c0_3, %c0_4] : memref<256x32xf32, #tpu.memory_space<vmem>>, vector<256x32xf32>
    %c0_5 = arith.constant 0 : index
    %c0_6 = arith.constant 0 : index
    %3 = vector.load %arg3[%c0_5, %c0_6] : memref<32x256xf32, #tpu.memory_space<vmem>>, vector<32x256xf32>
    %c0_7 = arith.constant 0 : index
    %c0_8 = arith.constant 0 : index
    %4 = vector.load %arg4[%c0_7, %c0_8] : memref<1x32xf32, #tpu.memory_space<vmem>>, vector<1x32xf32>
    %c0_9 = arith.constant 0 : index
    %5 = memref.load %arg5[%c0_9] : memref<1xf32, #tpu.memory_space<smem>>
    %6 = vector.broadcast %1 : vector<1x256xf32> to vector<8x256xf32>
    %7 = arith.subf %0, %6 : vector<8x256xf32>
    %cst = arith.constant dense<0.000000e+00> : vector<8x32xf32>
    %8 = tpu.matmul %7, %2, %cst {dimension_numbers = #tpu.dot_dimension_numbers<[1], [0], [0], [1], [0, 0, 1, 1], [], []>} : vector<8x256xf32>, vector<256x32xf32>, vector<8x32xf32> -> vector<8x32xf32>
    %cst_10 = arith.constant dense<0.000000e+00> : vector<8x256xf32>
    %9 = tpu.matmul %8, %3, %cst_10 {dimension_numbers = #tpu.dot_dimension_numbers<[1], [0], [0], [1], [0, 0, 1, 1], [], []>} : vector<8x32xf32>, vector<32x256xf32>, vector<8x256xf32> -> vector<8x256xf32>
    %10 = arith.subf %9, %7 : vector<8x256xf32>
    %11 = arith.mulf %10, %10 : vector<8x256xf32>
    %12 = vector.shape_cast %11 : vector<8x256xf32> to vector<1x8x256xf32>
    %cst_11 = arith.constant dense<0.000000e+00> : vector<1xf32>
    %13 = vector.multi_reduction <add>, %12, %cst_11 [1, 2] : vector<1x8x256xf32> to vector<1xf32>
    %14 = vector.shape_cast %13 : vector<1xf32> to vector<1x1x1xf32>
    %15 = vector.extract %14[0, 0, 0] : f32 from vector<1x1x1xf32>
    %cst_12 = arith.constant 8.000000e+00 : f32
    %16 = arith.divf %15, %cst_12 : f32
    %17 = math.exp %4 : vector<1x32xf32>
    %cst_13 = arith.constant 0.000000e+00 : f32
    %18 = vector.broadcast %cst_13 : f32 to vector<1x32xf32>
    %19 = arith.subf %18, %4 : vector<1x32xf32>
    %20 = math.exp %19 : vector<1x32xf32>
    %21 = arith.mulf %3, %3 : vector<32x256xf32>
    %cst_14 = arith.constant dense<0.000000e+00> : vector<1x256xf32>
    %22 = tpu.matmul %17, %21, %cst_14 {dimension_numbers = #tpu.dot_dimension_numbers<[1], [0], [0], [1], [0, 0, 1, 1], [], []>} : vector<1x32xf32>, vector<32x256xf32>, vector<1x256xf32> -> vector<1x256xf32>
    %23 = vector.shape_cast %22 : vector<1x256xf32> to vector<1x1x256xf32>
    %cst_15 = arith.constant dense<0.000000e+00> : vector<1xf32>
    %24 = vector.multi_reduction <add>, %23, %cst_15 [1, 2] : vector<1x1x256xf32> to vector<1xf32>
    %25 = vector.shape_cast %24 : vector<1xf32> to vector<1x1x1xf32>
    %26 = vector.extract %25[0, 0, 0] : f32 from vector<1x1x1xf32>
    %27 = arith.addf %26, %16 : f32
    %28 = vector.shape_cast %20 : vector<1x32xf32> to vector<1x1x32xf32>
    %cst_16 = arith.constant dense<0.000000e+00> : vector<1xf32>
    %29 = vector.multi_reduction <add>, %28, %cst_16 [1, 2] : vector<1x1x32xf32> to vector<1xf32>
    %30 = vector.shape_cast %29 : vector<1xf32> to vector<1x1x1xf32>
    %31 = vector.extract %30[0, 0, 0] : f32 from vector<1x1x1xf32>
    %cst_17 = arith.constant 3.200000e+01 : f32
    %32 = arith.divf %31, %cst_17 : f32
    %33 = arith.mulf %27, %32 : f32
    %cst_18 = arith.constant 1.83787704 : f32
    %34 = arith.addf %cst_18, %5 : f32
    %cst_19 = arith.constant 2.560000e+02 : f32
    %35 = arith.mulf %cst_19, %34 : f32
    %36 = arith.addf %33, %35 : f32
    %cst_20 = arith.constant 5.000000e-01 : f32
    %37 = arith.mulf %cst_20, %36 : f32
    %38 = arith.subf %17, %4 : vector<1x32xf32>
    %39 = vector.shape_cast %38 : vector<1x32xf32> to vector<1x1x32xf32>
    %cst_21 = arith.constant dense<0.000000e+00> : vector<1xf32>
    %40 = vector.multi_reduction <add>, %39, %cst_21 [1, 2] : vector<1x1x32xf32> to vector<1xf32>
    %41 = vector.shape_cast %40 : vector<1xf32> to vector<1x1x1xf32>
    %42 = vector.extract %41[0, 0, 0] : f32 from vector<1x1x1xf32>
    %43 = arith.mulf %8, %8 : vector<8x32xf32>
    %44 = vector.shape_cast %43 : vector<8x32xf32> to vector<1x8x32xf32>
    %cst_22 = arith.constant dense<0.000000e+00> : vector<1xf32>
    %45 = vector.multi_reduction <add>, %44, %cst_22 [1, 2] : vector<1x8x32xf32> to vector<1xf32>
    %46 = vector.shape_cast %45 : vector<1xf32> to vector<1x1x1xf32>
    %47 = vector.extract %46[0, 0, 0] : f32 from vector<1x1x1xf32>
    %cst_23 = arith.constant 8.000000e+00 : f32
    %48 = arith.divf %47, %cst_23 : f32
    %49 = arith.addf %42, %48 : f32
    %cst_24 = arith.constant 3.200000e+01 : f32
    %50 = arith.subf %49, %cst_24 : f32
    %cst_25 = arith.constant 5.000000e-01 : f32
    %51 = arith.mulf %cst_25, %50 : f32
    %52 = arith.addf %37, %51 : f32
    %53 = vector.broadcast %52 : f32 to vector<1x1xf32>
    %c0_26 = arith.constant 0 : index
    %c0_27 = arith.constant 0 : index
    %54 = vector.load %arg6[%c0_26, %c0_27] : memref<1x1xf32, #tpu.memory_space<vmem>>, vector<1x1xf32>
    tpu.vector_store %arg6[%c0_26, %c0_27], %53 {strides = array<i32>} : memref<1x1xf32, #tpu.memory_space<vmem>>, vector<1x1xf32>,
    return
  }
}

</mosaic_0001>

<llo_original>
// kernel: tpu_custom_call.1
$region0: #{tpu_custom_call.1}
  #allocation0 [shape = 'u32[]', space=smem, size = 0x4, offset = 0x4, fixed_abs, tag = 'smem constant byte address 0x4 - core index']
  #allocation1 [shape = 'u32[144,128]{1,0:T(1,128)}', space=vmem, size = 0x12000, scoped, tag = 'internal scratch']
  #allocation2 [shape = 'f32[1]{0:T(128)S(6)}', space=smem, size = 0x200, scoped, tag = 'scoped memory for tpu_custom_call.1']
  %s0 = inlined_call_operand.vmem [shape: f32[8,256], index: 0, kind: input, shape index: {}]
  %s1 = inlined_call_operand.vmem [shape: f32[1,256], index: 1, kind: input, shape index: {}]
  %s2 = inlined_call_operand.vmem [shape: f32[256,32], index: 2, kind: input, shape index: {}]
  %s3 = inlined_call_operand.vmem [shape: f32[32,256], index: 3, kind: input, shape index: {}]
  %s4 = inlined_call_operand.vmem [shape: f32[1,32], index: 4, kind: input, shape index: {}]
  %s5 = inlined_call_operand.<no memory space> [shape: f32[1], index: 5, kind: input, shape index: {}]
  %s6 = inlined_call_operand.hbm [shape: f32[1,1], index: 6, kind: output, shape index: {}]
  %s7 = sld [smem:[#allocation0]]
  $region34: #{tpu_custom_call.1} parent=0
    _
  %s9 = ssub.s32 1, %s7
  %s10 = scalar_select 0, %s9, %s7
  %11 = sst [smem:[#allocation2]] %s5
  $region1: #{tpu_custom_call.1} parent=0
    #allocation3 [shape = 'u8[512]{0}', space=vmem, size = 0x400, scoped, tag = 'output window, operand 0, single buffered']
    #allocation4 [shape = 's32[1]{0}', space=sflag, size = 0x4, scoped, tag = 'scoped memory for tpu_custom_call.1']
    %12 = vsyncpa [#allocation4], 0
    // Predicated region
    $region2: #{tpu_custom_call.1} parent=1 // pred_check
      _
    $region3: #{tpu_custom_call.1} parent=1 // pred_check_branch
      %14 = sbr.rel (0) target = $region5
    $region4: #{tpu_custom_call.1} parent=1 // pred_region
      _
    $region5: #{tpu_custom_call.1} parent=1 // pred_fallthru
      _
    // Predicated region
    $region6: #{tpu_custom_call.1} parent=1 // pred_check
      _
    $region7: #{tpu_custom_call.1} parent=1 // pred_check_branch
      %16 = sbr.rel (0) target = $region9
    $region8: #{tpu_custom_call.1} parent=1 // pred_region
      _
    $region9: #{tpu_custom_call.1} parent=1 // pred_fallthru
      _
    // Predicated region
    $region10: #{tpu_custom_call.1} parent=1 // pred_check
      _
    $region11: #{tpu_custom_call.1} parent=1 // pred_check_branch
      %18 = sbr.rel (0) target = $region13
    $region12: #{tpu_custom_call.1} parent=1 // pred_region
      _
    $region13: #{tpu_custom_call.1} parent=1 // pred_fallthru
      _
    // Predicated region
    $region14: #{tpu_custom_call.1} parent=1 // pred_check
      _
    $region15: #{tpu_custom_call.1} parent=1 // pred_check_branch
      %20 = sbr.rel (0) target = $region17
    $region16: #{tpu_custom_call.1} parent=1 // pred_region
      _
    $region17: #{tpu_custom_call.1} parent=1 // pred_fallthru
      _
    // Predicated region
    $region18: #{tpu_custom_call.1} parent=1 // pred_check
      _
    $region19: #{tpu_custom_call.1} parent=1 // pred_check_branch
      %22 = sbr.rel (0) target = $region21
    $region20: #{tpu_custom_call.1} parent=1 // pred_region
      _
    $region21: #{tpu_custom_call.1} parent=1 // pred_fallthru
      _
    // Predicated region
    $region22: #{tpu_custom_call.1} parent=1 // pred_check
      _
    $region23: #{tpu_custom_call.1} parent=1 // pred_check_branch
      %24 = sbr.rel (0) target = $region25
    $region24: #{tpu_custom_call.1} parent=1 // pred_region
      _
    $region25: #{tpu_custom_call.1} parent=1 // pred_fallthru
      _
    %v25 = vld [vmem:[%s0] sm:$0xff]
    %v26 = vld [vmem:[%s0 + $0x8] sm:$0xff]
    %v27 = vld [vmem:[%s1] sm:$0x3]
    %v28 = vld [vmem:[%s2] sm:$0xff]
    %v29 = vld [vmem:[%s2 + $0x8] sm:$0xff]
    %v30 = vld [vmem:[%s2 + $0x10] sm:$0xff]
    %v31 = vld [vmem:[%s2 + $0x18] sm:$0xff]
    %v32 = vld [vmem:[%s2 + $0x20] sm:$0xff]
    %v33 = vld [vmem:[%s2 + $0x28] sm:$0xff]
    %v34 = vld [vmem:[%s2 + $0x30] sm:$0xff]
    %v35 = vld [vmem:[%s2 + $0x38] sm:$0xff]
    %v36 = vld [vmem:[%s2 + $0x40] sm:$0xff]
    %v37 = vld [vmem:[%s2 + $0x48] sm:$0xff]
    %v38 = vld [vmem:[%s2 + $0x50] sm:$0xff]
    %v39 = vld [vmem:[%s2 + $0x58] sm:$0xff]
    %v40 = vld [vmem:[%s2 + $0x60] sm:$0xff]
    %v41 = vld [vmem:[%s2 + $0x68] sm:$0xff]
    %v42 = vld [vmem:[%s2 + $0x70] sm:$0xff]
    %v43 = vld [vmem:[%s2 + $0x78] sm:$0xff]
    %v44 = vld [vmem:[%s2 + $0x80] sm:$0xff]
    %v45 = vld [vmem:[%s2 + $0x88] sm:$0xff]
    %v46 = vld [vmem:[%s2 + $0x90] sm:$0xff]
    %v47 = vld [vmem:[%s2 + $0x98] sm:$0xff]
    %v48 = vld [vmem:[%s2 + $0xa0] sm:$0xff]
    %v49 = vld [vmem:[%s2 + $0xa8] sm:$0xff]
    %v50 = vld [vmem:[%s2 + $0xb0] sm:$0xff]
    %v51 = vld [vmem:[%s2 + $0xb8] sm:$0xff]
    %v52 = vld [vmem:[%s2 + $0xc0] sm:$0xff]
    %v53 = vld [vmem:[%s2 + $0xc8] sm:$0xff]
    %v54 = vld [vmem:[%s2 + $0xd0] sm:$0xff]
    %v55 = vld [vmem:[%s2 + $0xd8] sm:$0xff]
    %v56 = vld [vmem:[%s2 + $0xe0] sm:$0xff]
    %v57 = vld [vmem:[%s2 + $0xe8] sm:$0xff]
    %v58 = vld [vmem:[%s2 + $0xf0] sm:$0xff]
    %v59 = vld [vmem:[%s2 + $0xf8] sm:$0xff]
    %v60 = vld [vmem:[%s3] sm:$0xff]
    %v61 = vld [vmem:[%s3 + $0x8] sm:$0xff]
    %v62 = vld [vmem:[%s3 + $0x10] sm:$0xff]
    %v63 = vld [vmem:[%s3 + $0x18] sm:$0xff]
    %v64 = vld [vmem:[%s3 + $0x20] sm:$0xff]
    %v65 = vld [vmem:[%s3 + $0x28] sm:$0xff]
    %v66 = vld [vmem:[%s3 + $0x30] sm:$0xff]
    %v67 = vld [vmem:[%s3 + $0x38] sm:$0xff]
    %v68 = vld [vmem:[%s4] sm:$0x1]
    %s69 = sld [smem:[#allocation2]]
    %v71 = vlaneseq
    %v72 = vshrl.u32 %v71, 7
    %v73 = vsub.s32 0, %v72
    %v74 = vrot.slane %v27, %v73
    %v75 = vlaneseq
    %v76 = vshrl.u32 %v75, 7
    %v77 = vsub.s32 1, %v76
    %v78 = vrot.slane %v27, %v77
    %v81 = vsub.f32 %v25, %v74
    %v82 = vsub.f32 %v26, %v78
    %83 = vmatprep.subr.mxu0 0.0
    %84 = vmatpush1.msra.mxu0 %v28
    %85 = vmatprep.subr.mxu0 0.0
    %86 = vmatpush1.msra.mxu0 %v29
    %87 = vmatprep.subr.mxu0 0.0
    %88 = vmatpush1.msra.mxu0 %v30
    %89 = vmatprep.subr.mxu0 0.0
    %90 = vmatpush1.msra.mxu0 %v31
    %91 = vmatprep.subr.mxu0 0.0
    %92 = vmatpush1.msra.mxu0 %v32
    %93 = vmatprep.subr.mxu0 0.0
    %94 = vmatpush1.msra.mxu0 %v33
    %95 = vmatprep.subr.mxu0 0.0
    %96 = vmatpush1.msra.mxu0 %v34
    %97 = vmatprep.subr.mxu0 0.0
    %98 = vmatpush1.msra.mxu0 %v35
    %99 = vmatprep.subr.mxu0 0.0
    %100 = vmatpush1.msra.mxu0 %v36
    %101 = vmatprep.subr.mxu0 0.0
    %102 = vmatpush1.msra.mxu0 %v37
    %103 = vmatprep.subr.mxu0 0.0
    %104 = vmatpush1.msra.mxu0 %v38
    %105 = vmatprep.subr.mxu0 0.0
    %106 = vmatpush1.msra.mxu0 %v39
    %107 = vmatprep.subr.mxu0 0.0
    %108 = vmatpush1.msra.mxu0 %v40
    %109 = vmatprep.subr.mxu0 0.0
    %110 = vmatpush1.msra.mxu0 %v41
    %111 = vmatprep.subr.mxu0 0.0
    %112 = vmatpush1.msra.mxu0 %v42
    %113 = vmatprep.subr.mxu0 0.0
    %114 = vmatpush1.msra.mxu0 %v43
    %115 = vmatprep.subr.mxu0 0.0
    %116 = vmatpush1.msra.mxu0 %v44
    %117 = vmatprep.subr.mxu0 0.0
    %118 = vmatpush1.msra.mxu0 %v45
    %119 = vmatprep.subr.mxu0 0.0
    %120 = vmatpush1.msra.mxu0 %v46
    %121 = vmatprep.subr.mxu0 0.0
    %122 = vmatpush1.msra.mxu0 %v47
    %123 = vmatprep.subr.mxu0 0.0
    %124 = vmatpush1.msra.mxu0 %v48
    %125 = vmatprep.subr.mxu0 0.0
    %126 = vmatpush1.msra.mxu0 %v49
    %127 = vmatprep.subr.mxu0 0.0
    %128 = vmatpush1.msra.mxu0 %v50
    %129 = vmatprep.subr.mxu0 0.0
    %130 = vmatpush1.msra.mxu0 %v51
    %131 = vmatprep.subr.mxu0 0.0
    %132 = vmatpush1.msra.mxu0 %v52
    %133 = vmatprep.subr.mxu0 0.0
    %134 = vmatpush1.msra.mxu0 %v53
    %135 = vmatprep.subr.mxu0 0.0
    %136 = vmatpush1.msra.mxu0 %v54
    %137 = vmatprep.subr.mxu0 0.0
    %138 = vmatpush1.msra.mxu0 %v55
    %139 = vmatprep.subr.mxu0 0.0
    %140 = vmatpush1.msra.mxu0 %v56
    %141 = vmatprep.subr.mxu0 0.0
    %142 = vmatpush1.msra.mxu0 %v57
    %143 = vmatprep.subr.mxu0 0.0
    %144 = vmatpush1.msra.mxu0 %v58
    %145 = vmatprep.subr.mxu0 0.0
    %146 = vmatpush1.msra.mxu0 %v59
    %147 = vmatprep.mubr.f32.mxu0 %v82
    %148 = vmatmul.mubr.f32.gmra.mrb[0].mxu0 %v81
    %v149 = vpop.f32.mrb[0].mxu0
    %v150 = vadd.f32 0.0, %v149
    %v151 = vpop.f32.mrb[0].mxu0
    %152 = vdwg.mxu0
    %vm153 = vcmask 261120
    %v155 = vsel %vm153, %v150, 0
    %157 = vmatprep.subr.mxu0 %v61
    %158 = vmatpush1.msra.mxu0 %v60
    %159 = vmatprep.subr.mxu0 %v63
    %160 = vmatpush1.msra.mxu0 %v62
    %161 = vmatprep.subr.mxu0 %v65
    %162 = vmatpush1.msra.mxu0 %v64
    %163 = vmatprep.subr.mxu0 %v67
    %164 = vmatpush1.msra.mxu0 %v66
    %165 = vmatprep.subr.mxu0 0.0
    %166 = vmatpush1.msra.mxu0 0.0
    %167 = vmatprep.subr.mxu0 0.0
    %168 = vmatpush1.msra.mxu0 0.0
    %169 = vmatprep.subr.mxu0 0.0
    %170 = vmatpush1.msra.mxu0 0.0
    %171 = vmatprep.subr.mxu0 0.0
    %172 = vmatpush1.msra.mxu0 0.0
    %173 = vmatprep.subr.mxu0 0.0
    %174 = vmatpush1.msra.mxu0 0.0
    %175 = vmatprep.subr.mxu0 0.0
    %176 = vmatpush1.msra.mxu0 0.0
    %177 = vmatprep.subr.mxu0 0.0
    %178 = vmatpush1.msra.mxu0 0.0
    %179 = vmatprep.subr.mxu0 0.0
    %180 = vmatpush1.msra.mxu0 0.0
    %181 = vmatprep.subr.mxu0 0.0
    %182 = vmatpush1.msra.mxu0 0.0
    %183 = vmatprep.subr.mxu0 0.0
    %184 = vmatpush1.msra.mxu0 0.0
    %185 = vmatprep.subr.mxu0 0.0
    %186 = vmatpush1.msra.mxu0 0.0
    %187 = vmatprep.subr.mxu0 0.0
    %188 = vmatpush1.msra.mxu0 0.0
    %189 = vmatprep.subr.mxu0 0.0
    %190 = vmatpush1.msra.mxu0 0.0
    %191 = vmatprep.subr.mxu0 0.0
    %192 = vmatpush1.msra.mxu0 0.0
    %193 = vmatprep.subr.mxu0 0.0
    %194 = vmatpush1.msra.mxu0 0.0
    %195 = vmatprep.subr.mxu0 0.0
    %196 = vmatpush1.msra.mxu0 0.0
    %197 = vmatprep.subr.mxu0 0.0
    %198 = vmatpush1.msra.mxu0 0.0
    %199 = vmatprep.subr.mxu0 0.0
    %200 = vmatpush1.msra.mxu0 0.0
    %201 = vmatprep.subr.mxu0 0.0
    %202 = vmatpush1.msra.mxu0 0.0
    %203 = vmatprep.subr.mxu0 0.0
    %204 = vmatpush1.msra.mxu0 0.0
    %205 = vmatprep.subr.mxu0 0.0
    %206 = vmatpush1.msra.mxu0 0.0
    %207 = vmatprep.subr.mxu0 0.0
    %208 = vmatpush1.msra.mxu0 0.0
    %209 = vmatprep.subr.mxu0 0.0
    %210 = vmatpush1.msra.mxu0 0.0
    %211 = vmatprep.subr.mxu0 0.0
    %212 = vmatpush1.msra.mxu0 0.0
    %213 = vmatprep.subr.mxu0 0.0
    %214 = vmatpush1.msra.mxu0 0.0
    %215 = vmatprep.subr.mxu0 0.0
    %216 = vmatpush1.msra.mxu0 0.0
    %217 = vmatprep.subr.mxu0 0.0
    %218 = vmatpush1.msra.mxu0 0.0
    %219 = vmatprep.subr.mxu0 0.0
    %220 = vmatpush1.msra.mxu0 0.0
    %221 = vmatprep.mubr.f32.mxu0 0.0
    %222 = vmatmul.mubr.f32.gmra.mrb[0].mxu0 %v155
    %v223 = vpop.f32.mrb[0].mxu0
    %v224 = vadd.f32 0.0, %v223
    %v225 = vpop.f32.mrb[0].mxu0
    %v226 = vadd.f32 0.0, %v225
    %227 = vdwg.mxu0
    %v228 = vsub.f32 %v224, %v81
    %v229 = vsub.f32 %v226, %v82
    %v230 = vmul.f32 %v228, %v228
    %v231 = vmul.f32 %v229, %v229
    %v232 = vadd.f32 %v230, %v231
    %233 = vadd.xlane.f32.xlu0 %v232
    %v234 = vpop.xlane.xlu0 %233
    %v235 = vrot.slane %v234, 4
    %v236 = vadd.f32 %v234, %v235
    %v237 = vrot.slane %v236, 2
    %v238 = vadd.f32 %v236, %v237
    %v239 = vrot.slane %v238, 1
    %v240 = vadd.f32 %v238, %v239
    %s241 = vtos %v240
    %v242 = vrcp.pop 8.0
    %s243 = vtos %v242
    %s244 = smul.f32 %s241, %s243
    %v245 = vmul.f32 %v68, 1.442695
    %v246 = vpow.pop %v245
    %v247 = vsub.f32 0.0, %v68
    %v248 = vmul.f32 %v247, 1.442695
    %v249 = vpow.pop %v248
    %v250 = vmul.f32 %v60, %v60
    %v251 = vmul.f32 %v61, %v61
    %v252 = vmul.f32 %v62, %v62
    %v253 = vmul.f32 %v63, %v63
    %v254 = vmul.f32 %v64, %v64
    %v255 = vmul.f32 %v65, %v65
    %v256 = vmul.f32 %v66, %v66
    %v257 = vmul.f32 %v67, %v67
    %v259 = vsel %vm153, %v246, 0
    %261 = vmatprep.subr.mxu0 %v251
    %262 = vmatpush1.msra.mxu0 %v250
    %263 = vmatprep.subr.mxu0 %v253
    %264 = vmatpush1.msra.mxu0 %v252
    %265 = vmatprep.subr.mxu0 %v255
    %266 = vmatpush1.msra.mxu0 %v254
    %267 = vmatprep.subr.mxu0 %v257
    %268 = vmatpush1.msra.mxu0 %v256
    %269 = vmatprep.subr.mxu0 0.0
    %270 = vmatpush1.msra.mxu0 0.0
    %271 = vmatprep.subr.mxu0 0.0
    %272 = vmatpush1.msra.mxu0 0.0
    %273 = vmatprep.subr.mxu0 0.0
    %274 = vmatpush1.msra.mxu0 0.0
    %275 = vmatprep.subr.mxu0 0.0
    %276 = vmatpush1.msra.mxu0 0.0
    %277 = vmatprep.subr.mxu0 0.0
    %278 = vmatpush1.msra.mxu0 0.0
    %279 = vmatprep.subr.mxu0 0.0
    %280 = vmatpush1.msra.mxu0 0.0
    %281 = vmatprep.subr.mxu0 0.0
    %282 = vmatpush1.msra.mxu0 0.0
    %283 = vmatprep.subr.mxu0 0.0
    %284 = vmatpush1.msra.mxu0 0.0
    %285 = vmatprep.subr.mxu0 0.0
    %286 = vmatpush1.msra.mxu0 0.0
    %287 = vmatprep.subr.mxu0 0.0
    %288 = vmatpush1.msra.mxu0 0.0
    %289 = vmatprep.subr.mxu0 0.0
    %290 = vmatpush1.msra.mxu0 0.0
    %291 = vmatprep.subr.mxu0 0.0
    %292 = vmatpush1.msra.mxu0 0.0
    %293 = vmatprep.subr.mxu0 0.0
    %294 = vmatpush1.msra.mxu0 0.0
    %295 = vmatprep.subr.mxu0 0.0
    %296 = vmatpush1.msra.mxu0 0.0
    %297 = vmatprep.subr.mxu0 0.0
    %298 = vmatpush1.msra.mxu0 0.0
    %299 = vmatprep.subr.mxu0 0.0
    %300 = vmatpush1.msra.mxu0 0.0
    %301 = vmatprep.subr.mxu0 0.0
    %302 = vmatpush1.msra.mxu0 0.0
    %303 = vmatprep.subr.mxu0 0.0
    %304 = vmatpush1.msra.mxu0 0.0
    %305 = vmatprep.subr.mxu0 0.0
    %306 = vmatpush1.msra.mxu0 0.0
    %307 = vmatprep.subr.mxu0 0.0
    %308 = vmatpush1.msra.mxu0 0.0
    %309 = vmatprep.subr.mxu0 0.0
    %310 = vmatpush1.msra.mxu0 0.0
    %311 = vmatprep.subr.mxu0 0.0
    %312 = vmatpush1.msra.mxu0 0.0
    %313 = vmatprep.subr.mxu0 0.0
    %314 = vmatpush1.msra.mxu0 0.0
    %315 = vmatprep.subr.mxu0 0.0
    %316 = vmatpush1.msra.mxu0 0.0
    %317 = vmatprep.subr.mxu0 0.0
    %318 = vmatpush1.msra.mxu0 0.0
    %319 = vmatprep.subr.mxu0 0.0
    %320 = vmatpush1.msra.mxu0 0.0
    %321 = vmatprep.subr.mxu0 0.0
    %322 = vmatpush1.msra.mxu0 0.0
    %323 = vmatprep.subr.mxu0 0.0
    %324 = vmatpush1.msra.mxu0 0.0
    %325 = vmatprep.mubr.f32.mxu0 0.0
    %326 = vmatmul.mubr.f32.gmra.mrb[0].mxu0 %v259
    %v327 = vpop.f32.mrb[0].mxu0
    %v328 = vadd.f32 0.0, %v327
    %v329 = vpop.f32.mrb[0].mxu0
    %v330 = vadd.f32 0.0, %v329
    %331 = vdwg.mxu0
    %vm332 = vcmask 1040384
    %v333 = vsel %vm332, %v328, 0.0
    %v334 = vsel %vm332, %v330, 0.0
    %v335 = vadd.f32 %v333, %v334
    %336 = vadd.xlane.f32.xlu0 %v335
    %v337 = vpop.xlane.xlu0 %336
    %v338 = vrot.slane %v337, 4
    %v339 = vadd.f32 %v337, %v338
    %v340 = vrot.slane %v339, 2
    %v341 = vadd.f32 %v339, %v340
    %v342 = vrot.slane %v341, 1
    %v343 = vadd.f32 %v341, %v342
    %s344 = vtos %v343
    %s345 = sadd.f32 %s344, %s244
    %vm346 = vcmask 253952
    %v347 = vsel %vm346, %v249, 0.0
    %348 = vadd.xlane.f32.xlu0 %v347
    %v349 = vpop.xlane.xlu0 %348
    %v350 = vrot.slane %v349, 4
    %v351 = vadd.f32 %v349, %v350
    %v352 = vrot.slane %v351, 2
    %v353 = vadd.f32 %v351, %v352
    %v354 = vrot.slane %v353, 1
    %v355 = vadd.f32 %v353, %v354
    %s356 = vtos %v355
    %v357 = vrcp.pop 32.0
    %s358 = vtos %v357
    %s359 = smul.f32 %s356, %s358
    %s360 = smul.f32 %s345, %s359
    %s361 = sadd.f32 %s69, 1.837877
    %s362 = smul.f32 %s361, 256.0
    %s363 = sadd.f32 %s360, %s362
    %s364 = smul.f32 %s363, 0.5
    %v365 = vsub.f32 %v246, %v68
    %v366 = vsel %vm346, %v365, 0.0
    %367 = vadd.xlane.f32.xlu0 %v366
    %v368 = vpop.xlane.xlu0 %367
    %v369 = vrot.slane %v368, 4
    %v370 = vadd.f32 %v368, %v369
    %v371 = vrot.slane %v370, 2
    %v372 = vadd.f32 %v370, %v371
    %v373 = vrot.slane %v372, 1
    %v374 = vadd.f32 %v372, %v373
    %s375 = vtos %v374
    %v376 = vmul.f32 %v150, %v150
    %v377 = vsel %vm153, %v376, 0.0
    %378 = vadd.xlane.f32.xlu0 %v377
    %v379 = vpop.xlane.xlu0 %378
    %v380 = vrot.slane %v379, 4
    %v381 = vadd.f32 %v379, %v380
    %v382 = vrot.slane %v381, 2
    %v383 = vadd.f32 %v381, %v382
    %v384 = vrot.slane %v383, 1
    %v385 = vadd.f32 %v383, %v384
    %s386 = vtos %v385
    %v387 = vrcp.pop 8.0
    %s388 = vtos %v387
    %s389 = smul.f32 %s386, %s388
    %s390 = sadd.f32 %s375, %s389
    %s391 = ssub.f32 %s390, 32.0
    %s392 = smul.f32 %s391, 0.5
    %s393 = sadd.f32 %s364, %s392
    %v394 = vstv %s393
    %vm395 = vcmask 0
    %396 = vst.msk [vmem:[#allocation3] sm:$0x1] %vm395, %v394
    // Predicated region
    $region26: #{tpu_custom_call.1} parent=1 // pred_check
      _
    $region27: #{tpu_custom_call.1} parent=1 // pred_check_branch
      %398 = sbr.rel (0) target = $region29
    $region28: #{tpu_custom_call.1} parent=1 // pred_region
      %s400 = ssub.s32 16, 16
      %401 = vsyncadd [#allocation4], %s400
      %s403 = sshll.u32 [#allocation3], 4
      %s404 = int_to_ptr.vmem [resolvable:$true] %s403
      %406 = dma.vmem_to_hbm [thread:$0]  %s404, 16, %s6, [#allocation4]
    $region29: #{tpu_custom_call.1} parent=1 // pred_fallthru
      _
    // Predicated region
    $region30: #{tpu_custom_call.1} parent=1 // pred_check
      _
    $region31: #{tpu_custom_call.1} parent=1 // pred_check_branch
      %408 = sbr.rel (0) target = $region33
    $region32: #{tpu_custom_call.1} parent=1 // pred_region
      %409 = dma.done [#allocation4], 16
    $region33: #{tpu_custom_call.1} parent=1 // pred_fallthru
      _
    %410 = vsyncpa [#allocation4], 1

</llo_original>
